<compile_context>
chip_gen: v6e
topology: v6e:2x2x1
jax: 0.10.0
libtpu: 0.0.40
codegen_flags: <defaults>
</compile_context>

<pallas_src>
import functools

import jax
import jax.numpy as jnp
from jax.experimental import pallas as pl
from jax.experimental.pallas import tpu as pltpu

_MASK_NEG = -1.0e30  # finite "-inf": avoids inf-inf NaNs on fully padded columns


def _pad8(v):
    return ((v + 7) // 8) * 8


def _live_vmem_bytes(c, mid, tp, x_bytes):
    """Approximate live VMEM bytes for one grid step (drives tile sizing)."""
    x_blocks = 2 * _pad8(c) * tp * x_bytes      # double-buffered streamed x tile
    x_f32 = _pad8(c) * tp * 4                   # in-kernel f32 upcast (VPU path)
    pre_h = 2 * _pad8(mid + 1) * tp * 4         # fused pre-activation + tanh result
    rows = 8 * 8 * tp * 4                       # s/y/e rows + m/l/num accumulators
    return x_blocks + x_f32 + pre_h + rows


def _deepmil_kernel(x_ref, w_ref, b1_ref, w2_ref, m_ref, l_ref, num_ref, *,
                    mid, c, tp, tiles_per_split, p_real, needs_mask, use_mxu):
    t = pl.program_id(2)

    # Init per-column online-softmax state at the first pixel tile of this split.
    @pl.when(t == 0)
    def _init():
        m_ref[...] = jnp.full((1, 1, 1, tp), _MASK_NEG, jnp.float32)
        l_ref[...] = jnp.zeros((1, 1, 1, tp), jnp.float32)
        num_ref[...] = jnp.zeros((1, 1, 1, tp), jnp.float32)

    x = x_ref[0]                                    # (C, TP) streamed tile (bf16)

    # Fused (w1; wc) @ x.  Tiny C -> VPU broadcast-multiply; big C -> MXU (bf16).
    if use_mxu:
        pre = jnp.dot(w_ref[...], x, preferred_element_type=jnp.float32)
    else:
        xf = x.astype(jnp.float32)
        w = w_ref[...]
        pre = w[:, 0:1] * xf[0:1, :]
        for ci in range(1, c):
            pre = pre + w[:, ci:ci + 1] * xf[ci:ci + 1, :]
    # pre: (mid+1, TP) f32.  Rows [0:mid] -> attention hidden, row [mid] -> wc @ x.
    h = jnp.tanh(pre[:mid, :] + b1_ref[...])        # (mid, TP)  EUP
    y = pre[mid:mid + 1, :]                         # (1, TP)    per-pixel class head
    # attention scores ('+ b2' omitted: exact no-op under softmax)
    s = jnp.dot(w2_ref[...], h, preferred_element_type=jnp.float32)   # (1, TP)

    if needs_mask:
        col0 = (pl.program_id(1) * tiles_per_split + t) * tp
        cols = col0 + jax.lax.broadcasted_iota(jnp.int32, (1, tp), 1)
        s = jnp.where(cols < p_real, s, _MASK_NEG)

    # Online softmax with per-column (lane-dense) accumulators: pure VPU/EUP work,
    # no cross-lane reductions, no scalar dependency chain in the hot loop.
    m_prev = m_ref[...].reshape(1, tp)
    l_prev = l_ref[...].reshape(1, tp)
    n_prev = num_ref[...].reshape(1, tp)
    m_new = jnp.maximum(m_prev, s)
    alpha = jnp.exp(m_prev - m_new)
    e = jnp.exp(s - m_new)
    l_new = alpha * l_prev + e
    n_new = alpha * n_prev + e * y
    m_ref[...] = m_new.reshape(1, 1, 1, tp)
    l_ref[...] = l_new.reshape(1, 1, 1, tp)
    num_ref[...] = n_new.reshape(1, 1, 1, tp)


def deepmil_forward(x_nchw, params, *, stream_dtype=jnp.bfloat16, n_split=2,
                    vmem_budget_bytes=20 << 20):
    """DeepMIL forward (gated=False). x_nchw: (N, C, H, W). Returns (N,) logits."""
    w1, b1, w2, b2, wc, bc = params
    del b2  # constant added to every attention score: exact no-op under softmax
    n, c, hh, ww = x_nchw.shape
    p = hh * ww
    mid = w1.shape[0]

    # v7x megacore: split the pixel axis into parallel halves so N=1 still uses
    # both TensorCores; harmless on single-TC v5e/v6e.
    n_split = max(1, min(n_split, p // 128))
    x_bytes = jnp.dtype(stream_dtype).itemsize

    # Tile sizing against the real live footprint (x buffers + tanh intermediate).
    tp = 128
    p_per_split = pl.cdiv(p, n_split)
    while (tp * 2 <= p_per_split
           and _live_vmem_bytes(c, mid, tp * 2, x_bytes) <= vmem_budget_bytes):
        tp *= 2
    tiles_per_split = pl.cdiv(p_per_split, tp)
    p_padded = n_split * tiles_per_split * tp
    needs_mask = p_padded != p

    x_ncp = x_nchw.reshape(n, c, p)                     # == torch's x.flatten(2)
    if needs_mask:
        x_ncp = jnp.pad(x_ncp, ((0, 0), (0, 0), (0, p_padded - p)))
    x_ncp = x_ncp.astype(stream_dtype)                  # halve the HBM stream

    use_mxu = c >= 64
    w_full = jnp.concatenate([w1, wc], axis=0).astype(jnp.float32)   # (mid+1, C)
    if use_mxu:
        w_full = w_full.astype(stream_dtype)
    b1f = b1.astype(jnp.float32)
    w2f = w2.astype(jnp.float32)

    kernel = functools.partial(
        _deepmil_kernel, mid=mid, c=c, tp=tp, tiles_per_split=tiles_per_split,
        p_real=p, needs_mask=needs_mask, use_mxu=use_mxu)

    acc_shape = jax.ShapeDtypeStruct((n, n_split, 1, tp), jnp.float32)
    acc_spec = pl.BlockSpec((1, 1, 1, tp), lambda i, s, t: (i, s, 0, 0))

    m_out, l_out, num_out = pl.pallas_call(
        kernel,
        out_shape=(acc_shape, acc_shape, acc_shape),
        grid_spec=pltpu.PrefetchScalarGridSpec(
            num_scalar_prefetch=0,
            grid=(n, n_split, tiles_per_split),
            in_specs=[
                # streamed pixel tiles of x (add pipeline_mode=pl.Buffered(3) only
                # if profiling still shows exposed DMA)
                pl.BlockSpec((1, c, tp),
                             lambda i, s, t: (i, 0, s * tiles_per_split + t)),
                # small weights: whole-array, VMEM-resident
                pl.BlockSpec((mid + 1, c), lambda i, s, t: (0, 0)),
                pl.BlockSpec((mid, 1), lambda i, s, t: (0, 0)),
                pl.BlockSpec((1, mid), lambda i, s, t: (0, 0)),
            ],
            out_specs=[acc_spec, acc_spec, acc_spec],
        ),
        compiler_params=pltpu.CompilerParams(
            dimension_semantics=("parallel", "parallel", "arbitrary"),
            vmem_limit_bytes=48 * 1024 * 1024,
        ),
    )(x_ncp, w_full, b1f, w2f)

    # Combine per-(split, column) online-softmax partials; apply the scalar bias.
    m_flat = m_out.reshape(n, -1)
    scale = jnp.exp(m_flat - jnp.max(m_flat, axis=1, keepdims=True))
    denom = jnp.sum(scale * l_out.reshape(n, -1), axis=1)
    numer = jnp.sum(scale * num_out.reshape(n, -1), axis=1)
    return numer / denom + bc.reshape(-1)[0]


def deepmil_reference(x_nchw, params):
    """Pure-JAX reference mirroring the PyTorch forward (keeps '+ b2')."""
    w1, b1, w2, b2, wc, bc = params
    n, c, hh, ww = x_nchw.shape
    xf = x_nchw.reshape(n, c, hh * ww).astype(jnp.float32)
    h = jnp.tanh(jnp.einsum('mc,ncp->nmp', w1, xf) + b1[None])     # (n, M, P)
    s = jnp.einsum('km,nmp->nkp', w2, h) + b2[None]                # (n, 1, P)
    a = jax.nn.softmax(s.reshape(n, -1), axis=1)                   # (n, P)
    pooled = jnp.einsum('np,ncp->nc', a, xf)                       # (n, C)
    logits = pooled @ wc.T + bc[:, 0]                              # (n, 1)
    return logits[:, 0]


def init_params(key, in_channels, mid_channels):
    """Deterministic synthetic parameters (shapes match the PyTorch module)."""
    ks = jax.random.split(key, 6)
    w1 = 0.1 * jax.random.normal(ks[0], (mid_channels, in_channels), jnp.float32)
    b1 = 0.1 * jax.random.normal(ks[1], (mid_channels, 1), jnp.float32)
    w2 = 0.1 * jax.random.normal(ks[2], (1, mid_channels), jnp.float32)
    b2 = 0.1 * jax.random.normal(ks[3], (1, 1), jnp.float32)
    wc = 0.1 * jax.random.normal(ks[4], (1, in_channels), jnp.float32)
    bc = 0.1 * jax.random.normal(ks[5], (1, 1), jnp.float32)
    return (w1, b1, w2, b2, wc, bc)


if __name__ == "__main__":
    keys = jax.random.split(jax.random.PRNGKey(0), 4)

    # Config 1: batch=2, channels=4, 16x16 spatial (H*W = 256, no padding needed).
    N, C, H, W_, MID = 2, 4, 16, 16, 32
    x1 = jax.random.normal(keys[0], (N, C, H, W_), jnp.float32)
    p1 = init_params(keys[1], C, MID)
    out1 = jax.block_until_ready(deepmil_forward(x1, p1))
    ref1 = deepmil_reference(x1.astype(jnp.bfloat16).astype(jnp.float32), p1)
    assert out1.shape == (N,)
    assert jnp.allclose(out1, ref1, rtol=1e-3, atol=1e-3), (out1, ref1)

    # Config 2: single bag, ragged pixel count (10x10 = 100 -> padded & masked).
    x2 = jax.random.normal(keys[2], (1, C, 10, 10), jnp.float32)
    p2 = init_params(keys[3], C, MID)
    out2 = jax.block_until_ready(deepmil_forward(x2, p2))
    ref2 = deepmil_reference(x2.astype(jnp.bfloat16).astype(jnp.float32), p2)
    assert out2.shape == (1,)
    assert jnp.allclose(out2, ref2, rtol=1e-3, atol=1e-3), (out2, ref2)

    print("KERNEL_OK")
</pallas_src>

<mosaic_0001>
module attributes {stable_mosaic.version = 11 : i64} {
  func.func @_deepmil_kernel(%arg0: i32, %arg1: i32, %arg2: i32, %arg3: memref<1x4x128xbf16, #tpu.memory_space<vmem>>, %arg4: memref<33x4xf32, #tpu.memory_space<vmem>>, %arg5: memref<32x1xf32, #tpu.memory_space<vmem>>, %arg6: memref<1x32xf32, #tpu.memory_space<vmem>>, %arg7: memref<1x1x1x128xf32, #tpu.memory_space<vmem>>, %arg8: memref<1x1x1x128xf32, #tpu.memory_space<vmem>>, %arg9: memref<1x1x1x128xf32, #tpu.memory_space<vmem>>) attributes {dimension_semantics = [#tpu.dimension_semantics<parallel>, #tpu.dimension_semantics<parallel>, #tpu.dimension_semantics<arbitrary>], iteration_bounds = array<i64: 2, 2, 1>, scalar_prefetch = 0 : i64, scratch_operands = 0 : i64, tpu.core_type = #tpu.core_type<tc>, window_params = [{transform_indices = @transform_0, window_bounds = array<i64: 1, 4, 128>}, {pipeline_mode = #tpu.pipeline_mode<synchronous>, transform_indices = @transform_1, window_bounds = array<i64: 33, 4>}, {pipeline_mode = #tpu.pipeline_mode<synchronous>, transform_indices = @transform_2, window_bounds = array<i64: 32, 1>}, {pipeline_mode = #tpu.pipeline_mode<synchronous>, transform_indices = @transform_3, window_bounds = array<i64: 1, 32>}, {transform_indices = @transform_4, window_bounds = array<i64: 1, 1, 1, 128>}, {transform_indices = @transform_5, window_bounds = array<i64: 1, 1, 1, 128>}, {transform_indices = @transform_6, window_bounds = array<i64: 1, 1, 1, 128>}]} {
    %c0_i32 = arith.constant 0 : i32
    %0 = arith.cmpi eq, %arg2, %c0_i32 : i32
    %1 = arith.extui %0 : i1 to i32
    %c0_i32_0 = arith.constant 0 : i32
    %2 = arith.cmpi ne, %1, %c0_i32_0 : i32
    scf.if %2 {
      %cst_33 = arith.constant -1.000000e+30 : f32
      %60 = vector.broadcast %cst_33 : f32 to vector<1x1x1x128xf32>
      %c0_34 = arith.constant 0 : index
      %c0_35 = arith.constant 0 : index
      %c0_36 = arith.constant 0 : index
      %c0_37 = arith.constant 0 : index
      %61 = vector.load %arg7[%c0_34, %c0_35, %c0_36, %c0_37] : memref<1x1x1x128xf32, #tpu.memory_space<vmem>>, vector<1x1x1x128xf32>
      tpu.vector_store %arg7[%c0_34, %c0_35, %c0_36, %c0_37], %60 {strides = array<i32>} : memref<1x1x1x128xf32, #tpu.memory_space<vmem>>, vector<1x1x1x128xf32>,
      %cst_38 = arith.constant 0.000000e+00 : f32
      %62 = vector.broadcast %cst_38 : f32 to vector<1x1x1x128xf32>
      %c0_39 = arith.constant 0 : index
      %c0_40 = arith.constant 0 : index
      %c0_41 = arith.constant 0 : index
      %c0_42 = arith.constant 0 : index
      %63 = vector.load %arg8[%c0_39, %c0_40, %c0_41, %c0_42] : memref<1x1x1x128xf32, #tpu.memory_space<vmem>>, vector<1x1x1x128xf32>
      tpu.vector_store %arg8[%c0_39, %c0_40, %c0_41, %c0_42], %62 {strides = array<i32>} : memref<1x1x1x128xf32, #tpu.memory_space<vmem>>, vector<1x1x1x128xf32>,
      %cst_43 = arith.constant 0.000000e+00 : f32
      %64 = vector.broadcast %cst_43 : f32 to vector<1x1x1x128xf32>
      %c0_44 = arith.constant 0 : index
      %c0_45 = arith.constant 0 : index
      %c0_46 = arith.constant 0 : index
      %c0_47 = arith.constant 0 : index
      %65 = vector.load %arg9[%c0_44, %c0_45, %c0_46, %c0_47] : memref<1x1x1x128xf32, #tpu.memory_space<vmem>>, vector<1x1x1x128xf32>
      tpu.vector_store %arg9[%c0_44, %c0_45, %c0_46, %c0_47], %64 {strides = array<i32>} : memref<1x1x1x128xf32, #tpu.memory_space<vmem>>, vector<1x1x1x128xf32>,
    } else {
    }
    %c0 = arith.constant 0 : index
    %c0_1 = arith.constant 0 : index
    %c0_2 = arith.constant 0 : index
    %3 = vector.load %arg3[%c0, %c0_1, %c0_2] : memref<1x4x128xbf16, #tpu.memory_space<vmem>>, vector<1x4x128xbf16>
    %4 = vector.shape_cast %3 : vector<1x4x128xbf16> to vector<4x128xbf16>
    %5 = arith.extf %4 : vector<4x128xbf16> to vector<4x128xf32>
    %c0_3 = arith.constant 0 : index
    %c0_4 = arith.constant 0 : index
    %6 = vector.load %arg4[%c0_3, %c0_4] : memref<33x4xf32, #tpu.memory_space<vmem>>, vector<33x4xf32>
    %7 = vector.extract_strided_slice %6 {offsets = [0, 0], sizes = [33, 1], strides = [1, 1]} : vector<33x4xf32> to vector<33x1xf32>
    %8 = vector.extract_strided_slice %5 {offsets = [0, 0], sizes = [1, 128], strides = [1, 1]} : vector<4x128xf32> to vector<1x128xf32>
    %9 = vector.broadcast %7 : vector<33x1xf32> to vector<33x128xf32>
    %10 = vector.broadcast %8 : vector<1x128xf32> to vector<33x128xf32>
    %11 = arith.mulf %9, %10 : vector<33x128xf32>
    %12 = vector.extract_strided_slice %6 {offsets = [0, 1], sizes = [33, 1], strides = [1, 1]} : vector<33x4xf32> to vector<33x1xf32>
    %13 = vector.extract_strided_slice %5 {offsets = [1, 0], sizes = [1, 128], strides = [1, 1]} : vector<4x128xf32> to vector<1x128xf32>
    %14 = vector.broadcast %12 : vector<33x1xf32> to vector<33x128xf32>
    %15 = vector.broadcast %13 : vector<1x128xf32> to vector<33x128xf32>
    %16 = arith.mulf %14, %15 : vector<33x128xf32>
    %17 = arith.addf %11, %16 : vector<33x128xf32>
    %18 = vector.extract_strided_slice %6 {offsets = [0, 2], sizes = [33, 1], strides = [1, 1]} : vector<33x4xf32> to vector<33x1xf32>
    %19 = vector.extract_strided_slice %5 {offsets = [2, 0], sizes = [1, 128], strides = [1, 1]} : vector<4x128xf32> to vector<1x128xf32>
    %20 = vector.broadcast %18 : vector<33x1xf32> to vector<33x128xf32>
    %21 = vector.broadcast %19 : vector<1x128xf32> to vector<33x128xf32>
    %22 = arith.mulf %20, %21 : vector<33x128xf32>
    %23 = arith.addf %17, %22 : vector<33x128xf32>
    %24 = vector.extract_strided_slice %6 {offsets = [0, 3], sizes = [33, 1], strides = [1, 1]} : vector<33x4xf32> to vector<33x1xf32>
    %25 = vector.extract_strided_slice %5 {offsets = [3, 0], sizes = [1, 128], strides = [1, 1]} : vector<4x128xf32> to vector<1x128xf32>
    %26 = vector.broadcast %24 : vector<33x1xf32> to vector<33x128xf32>
    %27 = vector.broadcast %25 : vector<1x128xf32> to vector<33x128xf32>
    %28 = arith.mulf %26, %27 : vector<33x128xf32>
    %29 = arith.addf %23, %28 : vector<33x128xf32>
    %30 = vector.extract_strided_slice %29 {offsets = [0, 0], sizes = [32, 128], strides = [1, 1]} : vector<33x128xf32> to vector<32x128xf32>
    %c0_5 = arith.constant 0 : index
    %c0_6 = arith.constant 0 : index
    %31 = vector.load %arg5[%c0_5, %c0_6] : memref<32x1xf32, #tpu.memory_space<vmem>>, vector<32x1xf32>
    %32 = vector.broadcast %31 : vector<32x1xf32> to vector<32x128xf32>
    %33 = arith.addf %30, %32 : vector<32x128xf32>
    %34 = math.tanh %33 : vector<32x128xf32>
    %35 = vector.extract_strided_slice %29 {offsets = [32, 0], sizes = [1, 128], strides = [1, 1]} : vector<33x128xf32> to vector<1x128xf32>
    %c0_7 = arith.constant 0 : index
    %c0_8 = arith.constant 0 : index
    %36 = vector.load %arg6[%c0_7, %c0_8] : memref<1x32xf32, #tpu.memory_space<vmem>>, vector<1x32xf32>
    %cst = arith.constant dense<0.000000e+00> : vector<1x128xf32>
    %37 = tpu.matmul %36, %34, %cst {dimension_numbers = #tpu.dot_dimension_numbers<[1], [0], [0], [1], [0, 0, 1, 1], [], []>} : vector<1x32xf32>, vector<32x128xf32>, vector<1x128xf32> -> vector<1x128xf32>
    %c0_9 = arith.constant 0 : index
    %c0_10 = arith.constant 0 : index
    %c0_11 = arith.constant 0 : index
    %c0_12 = arith.constant 0 : index
    %38 = vector.load %arg7[%c0_9, %c0_10, %c0_11, %c0_12] : memref<1x1x1x128xf32, #tpu.memory_space<vmem>>, vector<1x1x1x128xf32>
    %39 = vector.shape_cast %38 : vector<1x1x1x128xf32> to vector<1x128xf32>
    %c0_13 = arith.constant 0 : index
    %c0_14 = arith.constant 0 : index
    %c0_15 = arith.constant 0 : index
    %c0_16 = arith.constant 0 : index
    %40 = vector.load %arg8[%c0_13, %c0_14, %c0_15, %c0_16] : memref<1x1x1x128xf32, #tpu.memory_space<vmem>>, vector<1x1x1x128xf32>
    %41 = vector.shape_cast %40 : vector<1x1x1x128xf32> to vector<1x128xf32>
    %c0_17 = arith.constant 0 : index
    %c0_18 = arith.constant 0 : index
    %c0_19 = arith.constant 0 : index
    %c0_20 = arith.constant 0 : index
    %42 = vector.load %arg9[%c0_17, %c0_18, %c0_19, %c0_20] : memref<1x1x1x128xf32, #tpu.memory_space<vmem>>, vector<1x1x1x128xf32>
    %43 = vector.shape_cast %42 : vector<1x1x1x128xf32> to vector<1x128xf32>
    %44 = arith.maximumf %39, %37 : vector<1x128xf32>
    %45 = arith.subf %39, %44 : vector<1x128xf32>
    %46 = math.exp %45 : vector<1x128xf32>
    %47 = arith.subf %37, %44 : vector<1x128xf32>
    %48 = math.exp %47 : vector<1x128xf32>
    %49 = arith.mulf %46, %41 : vector<1x128xf32>
    %50 = arith.addf %49, %48 : vector<1x128xf32>
    %51 = arith.mulf %46, %43 : vector<1x128xf32>
    %52 = arith.mulf %48, %35 : vector<1x128xf32>
    %53 = arith.addf %51, %52 : vector<1x128xf32>
    %54 = vector.shape_cast %44 : vector<1x128xf32> to vector<1x1x1x128xf32>
    %c0_21 = arith.constant 0 : index
    %c0_22 = arith.constant 0 : index
    %c0_23 = arith.constant 0 : index
    %c0_24 = arith.constant 0 : index
    %55 = vector.load %arg7[%c0_21, %c0_22, %c0_23, %c0_24] : memref<1x1x1x128xf32, #tpu.memory_space<vmem>>, vector<1x1x1x128xf32>
    tpu.vector_store %arg7[%c0_21, %c0_22, %c0_23, %c0_24], %54 {strides = array<i32>} : memref<1x1x1x128xf32, #tpu.memory_space<vmem>>, vector<1x1x1x128xf32>,
    %56 = vector.shape_cast %50 : vector<1x128xf32> to vector<1x1x1x128xf32>
    %c0_25 = arith.constant 0 : index
    %c0_26 = arith.constant 0 : index
    %c0_27 = arith.constant 0 : index
    %c0_28 = arith.constant 0 : index
    %57 = vector.load %arg8[%c0_25, %c0_26, %c0_27, %c0_28] : memref<1x1x1x128xf32, #tpu.memory_space<vmem>>, vector<1x1x1x128xf32>
    tpu.vector_store %arg8[%c0_25, %c0_26, %c0_27, %c0_28], %56 {strides = array<i32>} : memref<1x1x1x128xf32, #tpu.memory_space<vmem>>, vector<1x1x1x128xf32>,
    %58 = vector.shape_cast %53 : vector<1x128xf32> to vector<1x1x1x128xf32>
    %c0_29 = arith.constant 0 : index
    %c0_30 = arith.constant 0 : index
    %c0_31 = arith.constant 0 : index
    %c0_32 = arith.constant 0 : index
    %59 = vector.load %arg9[%c0_29, %c0_30, %c0_31, %c0_32] : memref<1x1x1x128xf32, #tpu.memory_space<vmem>>, vector<1x1x1x128xf32>
    tpu.vector_store %arg9[%c0_29, %c0_30, %c0_31, %c0_32], %58 {strides = array<i32>} : memref<1x1x1x128xf32, #tpu.memory_space<vmem>>, vector<1x1x1x128xf32>,
    return
  }
  func.func @transform_0(%arg0: i32, %arg1: i32, %arg2: i32) -> (i32, i32, i32) {
    %c1_i32 = arith.constant 1 : i32
    %0 = arith.muli %arg1, %c1_i32 : i32
    %1 = arith.addi %0, %arg2 : i32
    %c0_i32 = arith.constant 0 : i32
    %c0_i32_0 = arith.constant 0 : i32
    return %arg0, %c0_i32, %1 : i32, i32, i32
  }
  func.func @transform_1(%arg0: i32, %arg1: i32, %arg2: i32) -> (i32, i32) {
    %c0_i32 = arith.constant 0 : i32
    %c0_i32_0 = arith.constant 0 : i32
    %c0_i32_1 = arith.constant 0 : i32
    return %c0_i32, %c0_i32_0 : i32, i32
  }
  func.func @transform_2(%arg0: i32, %arg1: i32, %arg2: i32) -> (i32, i32) {
    %c0_i32 = arith.constant 0 : i32
    %c0_i32_0 = arith.constant 0 : i32
    %c0_i32_1 = arith.constant 0 : i32
    return %c0_i32, %c0_i32_0 : i32, i32
  }
  func.func @transform_3(%arg0: i32, %arg1: i32, %arg2: i32) -> (i32, i32) {
    %c0_i32 = arith.constant 0 : i32
    %c0_i32_0 = arith.constant 0 : i32
    %c0_i32_1 = arith.constant 0 : i32
    return %c0_i32, %c0_i32_0 : i32, i32
  }
  func.func @transform_4(%arg0: i32, %arg1: i32, %arg2: i32) -> (i32, i32, i32, i32) {
    %c0_i32 = arith.constant 0 : i32
    %c0_i32_0 = arith.constant 0 : i32
    %c0_i32_1 = arith.constant 0 : i32
    return %arg0, %arg1, %c0_i32, %c0_i32_0 : i32, i32, i32, i32
  }
  func.func @transform_5(%arg0: i32, %arg1: i32, %arg2: i32) -> (i32, i32, i32, i32) {
    %c0_i32 = arith.constant 0 : i32
    %c0_i32_0 = arith.constant 0 : i32
    %c0_i32_1 = arith.constant 0 : i32
    return %arg0, %arg1, %c0_i32, %c0_i32_0 : i32, i32, i32, i32
  }
  func.func @transform_6(%arg0: i32, %arg1: i32, %arg2: i32) -> (i32, i32, i32, i32) {
    %c0_i32 = arith.constant 0 : i32
    %c0_i32_0 = arith.constant 0 : i32
    %c0_i32_1 = arith.constant 0 : i32
    return %arg0, %arg1, %c0_i32, %c0_i32_0 : i32, i32, i32, i32
  }
}

</mosaic_0001>

<llo_original>
// kernel: tpu_custom_call.1
$region0: #{tpu_custom_call.1}
  #allocation0 [shape = 'u32[]', space=smem, size = 0x4, offset = 0x4, fixed_abs, tag = 'smem constant byte address 0x4 - core index']
  #allocation1 [shape = 'u32[144,128]{1,0:T(1,128)}', space=vmem, size = 0x12000, scoped, tag = 'internal scratch']
  %s0 = inlined_call_operand.vmem [shape: bf16[2,4,256], index: 0, kind: input, shape index: {}]
  %s1 = inlined_call_operand.vmem [shape: f32[33,4], index: 1, kind: input, shape index: {}]
  %s2 = inlined_call_operand.vmem [shape: f32[32,1], index: 2, kind: input, shape index: {}]
  %s3 = inlined_call_operand.vmem [shape: f32[1,32], index: 3, kind: input, shape index: {}]
  %s4 = inlined_call_operand.hbm [shape: f32[2,2,1,128], index: 4, kind: output, shape index: {0}]
  %s5 = inlined_call_operand.hbm [shape: f32[2,2,1,128], index: 5, kind: output, shape index: {1}]
  %s6 = inlined_call_operand.hbm [shape: f32[2,2,1,128], index: 6, kind: output, shape index: {2}]
  %7 = xla_tuple %s4, %s5, %s6
  %s8 = sld [smem:[#allocation0]]
  $region69: #{tpu_custom_call.1} parent=0
    _
  %s10 = ssub.s32 1, %s8
  %s11 = scalar_select 0, %s10, %s8
  $region1: #{tpu_custom_call.1} parent=0
    #allocation2 [shape = 'u8[1024]{0}', space=vmem, size = 0x400, scoped, tag = 'output window, operand 0']
    #allocation3 [shape = 's32[2]{0}', space=sflag, size = 0x8, scoped, tag = 'scoped memory for tpu_custom_call.1']
    #allocation4 [shape = 'u8[1024]{0}', space=vmem, size = 0x400, scoped, tag = 'output window, operand 1']
    #allocation5 [shape = 's32[2]{0}', space=sflag, size = 0x8, scoped, tag = 'scoped memory for tpu_custom_call.1']
    #allocation6 [shape = 'u8[1024]{0}', space=vmem, size = 0x400, scoped, tag = 'output window, operand 2']
    %12 = vsyncpa [#allocation3], 0
    %s13 = scalar_lea.sflag [#allocation3], 1
    %14 = vsyncpa %s13, 0
    %15 = vsyncpa [#allocation5], 0
    %s16 = scalar_lea.sflag [#allocation5], 1
    %17 = vsyncpa %s16, 0
    loop: start=0, step=1, limit=6
    $region2: #{tpu_custom_call.1} parent=1 // loop_pre_header
      _
    $region3: #{tpu_custom_call.1} parent=1 // loop_header
      %s19 = sphi 0, %s23
      %p20 = scmp.ge.s32.totalorder %s19, 6
      %s26 = sphi 0, %s45
      %s27 = sphi 0, %s41
      %s28 = sphi 0, %s37
      %s29 = sphi 0, %s26
      %s30 = sphi 0, %s27
      %s31 = sphi 0, %s28
      %s32 = sphi 0, %s29
      %s33 = sphi 0, %s30
      %s34 = sphi 0, %s31
      %s52 = sphi 0, %s54
      %s55 = sphi 0, %s52
      %s56 = sphi 0, %s55
      %s72 = sphi 0, %s56
      %s76 = sphi 0, %s76
      %s78 = sphi 0, %s76
      %s79 = sphi 0, %s78
      %s93 = sphi 0, %s79
      %s97 = sphi 0, %s97
      %s99 = sphi 0, %s97
      %s100 = sphi 0, %s99
      %s114 = sphi 0, %s100
      %s118 = sphi 0, %s118
      %s120 = sphi 0, %s118
      %s121 = sphi 0, %s120
      %s135 = sphi 0, %s121
      %s143 = sphi 0, %s145
      %s146 = sphi 0, %s143
      %s147 = sphi 0, %s146
      %s163 = sphi 0, %s147
      %s171 = sphi 0, %s173
      %s174 = sphi 0, %s171
      %s175 = sphi 0, %s174
      %s191 = sphi 0, %s175
      %s199 = sphi 0, %s201
      %s202 = sphi 0, %s199
      %s203 = sphi 0, %s202
      %s219 = sphi 0, %s203
    $region4: #{tpu_custom_call.1} parent=1 // loop_header_branch
      %22 = sbr.rel (%p20) target = $region8
    $region5: #{tpu_custom_call.1} parent=1 // loop_body
      %s24 = ssub.s32 %s19, 1
      %s25 = ssub.s32 %s19, 2
      %s35 = sadd.s32 1, %s28
      %p36 = scmp.ge.s32.totalorder %s35, 1
      %s37 = scalar_select %p36, 0, %s35
      %s38 = sadd.s32 1, %s27
      %s39 = scalar_select %p36, %s38, %s27
      %p40 = scmp.ge.s32.totalorder %s39, 2
      %s41 = scalar_select %p40, 0, %s39
      %s42 = sadd.s32 1, %s26
      %s43 = scalar_select %p40, %s42, %s26
      %p44 = scmp.ge.s32.totalorder %s43, 2
      %s45 = scalar_select %p44, 0, %s43
      %s46 = sadd.s32 %s27, %s28
      %s47 = sadd.s32 %s41, %s37
      %s48 = ssub.s32 %s26, %s45
      %s49 = ssub.s32 %s46, %s47
      %s50 = sor.u32 %s48, %s49
      %p51 = scmp.eq.s32.totalorder %s50, 0
      %s53 = sadd.s32 %s52, 1
      %s54 = scalar_select %p51, %s52, %s53
      %p57 = pneg %p51
      %p58 = scmp.eq.s32.totalorder %s19, 3
      %p59 = por %p57, %p58
      %p60 = scmp.ne.s32.totalorder %s52, %s55
      %p61 = scmp.eq.s32.totalorder %s19, 0
      %p62 = por %p60, %p61
      %p63 = scmp.ne.s32.totalorder %s52, %s55
      %p64 = scmp.eq.s32.totalorder %s24, 3
      %p65 = por %p63, %p64
      %p66 = scmp.ne.s32.totalorder %s55, %s56
      %p67 = scmp.eq.s32.totalorder %s24, 0
      %p68 = por %p66, %p67
      %p69 = scmp.ne.s32.totalorder %s55, %s56
      %p70 = scmp.eq.s32.totalorder %s25, 3
      %p71 = por %p69, %p70
      %p73 = scmp.ne.s32.totalorder %s56, %s72
      %p74 = scmp.eq.s32.totalorder %s25, 0
      %p75 = por %p73, %p74
      %s77 = sadd.s32 %s76, 1
      %p80 = scmp.eq.s32.totalorder %s19, 3
      %p81 = scmp.ne.s32.totalorder %s76, %s78
      %p82 = scmp.eq.s32.totalorder %s19, 0
      %p83 = por %p81, %p82
      %p84 = scmp.ne.s32.totalorder %s76, %s78
      %p85 = scmp.eq.s32.totalorder %s24, 3
      %p86 = por %p84, %p85
      %p87 = scmp.ne.s32.totalorder %s78, %s79
      %p88 = scmp.eq.s32.totalorder %s24, 0
      %p89 = por %p87, %p88
      %p90 = scmp.ne.s32.totalorder %s78, %s79
      %p91 = scmp.eq.s32.totalorder %s25, 3
      %p92 = por %p90, %p91
      %p94 = scmp.ne.s32.totalorder %s79, %s93
      %p95 = scmp.eq.s32.totalorder %s25, 0
      %p96 = por %p94, %p95
      %s98 = sadd.s32 %s97, 1
      %p101 = scmp.eq.s32.totalorder %s19, 3
      %p102 = scmp.ne.s32.totalorder %s97, %s99
      %p103 = scmp.eq.s32.totalorder %s19, 0
      %p104 = por %p102, %p103
      %p105 = scmp.ne.s32.totalorder %s97, %s99
      %p106 = scmp.eq.s32.totalorder %s24, 3
      %p107 = por %p105, %p106
      %p108 = scmp.ne.s32.totalorder %s99, %s100
      %p109 = scmp.eq.s32.totalorder %s24, 0
      %p110 = por %p108, %p109
      %p111 = scmp.ne.s32.totalorder %s99, %s100
      %p112 = scmp.eq.s32.totalorder %s25, 3
      %p113 = por %p111, %p112
      %p115 = scmp.ne.s32.totalorder %s100, %s114
      %p116 = scmp.eq.s32.totalorder %s25, 0
      %p117 = por %p115, %p116
      %s119 = sadd.s32 %s118, 1
      %p122 = scmp.eq.s32.totalorder %s19, 3
      %p123 = scmp.ne.s32.totalorder %s118, %s120
      %p124 = scmp.eq.s32.totalorder %s19, 0
      %p125 = por %p123, %p124
      %p126 = scmp.ne.s32.totalorder %s118, %s120
      %p127 = scmp.eq.s32.totalorder %s24, 3
      %p128 = por %p126, %p127
      %p129 = scmp.ne.s32.totalorder %s120, %s121
      %p130 = scmp.eq.s32.totalorder %s24, 0
      %p131 = por %p129, %p130
      %p132 = scmp.ne.s32.totalorder %s120, %s121
      %p133 = scmp.eq.s32.totalorder %s25, 3
      %p134 = por %p132, %p133
      %p136 = scmp.ne.s32.totalorder %s121, %s135
      %p137 = scmp.eq.s32.totalorder %s25, 0
      %p138 = por %p136, %p137
      %s139 = ssub.s32 %s26, %s45
      %s140 = ssub.s32 %s27, %s41
      %s141 = sor.u32 %s139, %s140
      %p142 = scmp.eq.s32.totalorder %s141, 0
      %s144 = sadd.s32 %s143, 1
      %s145 = scalar_select %p142, %s143, %s144
      %p148 = pneg %p142
      %p149 = scmp.eq.s32.totalorder %s19, 3
      %p150 = por %p148, %p149
      %p151 = scmp.ne.s32.totalorder %s143, %s146
      %p152 = scmp.eq.s32.totalorder %s19, 0
      %p153 = por %p151, %p152
      %p154 = scmp.ne.s32.totalorder %s143, %s146
      %p155 = scmp.eq.s32.totalorder %s24, 3
      %p156 = por %p154, %p155
      %p157 = scmp.ne.s32.totalorder %s146, %s147
      %p158 = scmp.eq.s32.totalorder %s24, 0
      %p159 = por %p157, %p158
      %p160 = scmp.ne.s32.totalorder %s146, %s147
      %p161 = scmp.eq.s32.totalorder %s25, 3
      %p162 = por %p160, %p161
      %p164 = scmp.ne.s32.totalorder %s147, %s163
      %p165 = scmp.eq.s32.totalorder %s25, 0
      %p166 = por %p164, %p165
      %s167 = ssub.s32 %s26, %s45
      %s168 = ssub.s32 %s27, %s41
      %s169 = sor.u32 %s167, %s168
      %p170 = scmp.eq.s32.totalorder %s169, 0
      %s172 = sadd.s32 %s171, 1
      %s173 = scalar_select %p170, %s171, %s172
      %p176 = pneg %p170
      %p177 = scmp.eq.s32.totalorder %s19, 3
      %p178 = por %p176, %p177
      %p179 = scmp.ne.s32.totalorder %s171, %s174
      %p180 = scmp.eq.s32.totalorder %s19, 0
      %p181 = por %p179, %p180
      %p182 = scmp.ne.s32.totalorder %s171, %s174
      %p183 = scmp.eq.s32.totalorder %s24, 3
      %p184 = por %p182, %p183
      %p185 = scmp.ne.s32.totalorder %s174, %s175
      %p186 = scmp.eq.s32.totalorder %s24, 0
      %p187 = por %p185, %p186
      %p188 = scmp.ne.s32.totalorder %s174, %s175
      %p189 = scmp.eq.s32.totalorder %s25, 3
      %p190 = por %p188, %p189
      %p192 = scmp.ne.s32.totalorder %s175, %s191
      %p193 = scmp.eq.s32.totalorder %s25, 0
      %p194 = por %p192, %p193
      %s195 = ssub.s32 %s26, %s45
      %s196 = ssub.s32 %s27, %s41
      %s197 = sor.u32 %s195, %s196
      %p198 = scmp.eq.s32.totalorder %s197, 0
      %s200 = sadd.s32 %s199, 1
      %s201 = scalar_select %p198, %s199, %s200
      %p204 = pneg %p198
      %p205 = scmp.eq.s32.totalorder %s19, 3
      %p206 = por %p204, %p205
      %p207 = scmp.ne.s32.totalorder %s199, %s202
      %p208 = scmp.eq.s32.totalorder %s19, 0
      %p209 = por %p207, %p208
      %p210 = scmp.ne.s32.totalorder %s199, %s202
      %p211 = scmp.eq.s32.totalorder %s24, 3
      %p212 = por %p210, %p211
      %p213 = scmp.ne.s32.totalorder %s202, %s203
      %p214 = scmp.eq.s32.totalorder %s24, 0
      %p215 = por %p213, %p214
      %p216 = scmp.ne.s32.totalorder %s202, %s203
      %p217 = scmp.eq.s32.totalorder %s25, 3
      %p218 = por %p216, %p217
      %p220 = scmp.ne.s32.totalorder %s203, %s219
      %p221 = scmp.eq.s32.totalorder %s25, 0
      %p222 = por %p220, %p221
      %p223 = scmp.le.s32.totalorder 1, %s19
      %p224 = scmp.lt.s32.totalorder %s19, 5
      %p225 = pnand %p223, %p224
      %p226 = pneg %p225
      // Predicated region
      $region9: #{tpu_custom_call.1} parent=5 // pred_check
        _
      $region10: #{tpu_custom_call.1} parent=5 // pred_check_branch
        %228 = sbr.rel (%p225) target = $region12
      $region11: #{tpu_custom_call.1} parent=5 // pred_region
        %s229 = ssub.s32 %s19, 1
        // Predicated region
        $region13: #{tpu_custom_call.1} parent=11 // pred_check
          %p230 = pneg %p89
        $region14: #{tpu_custom_call.1} parent=11 // pred_check_branch
          %232 = sbr.rel (%p230) target = $region16
        $region15: #{tpu_custom_call.1} parent=11 // pred_region
          _
        $region16: #{tpu_custom_call.1} parent=11 // pred_fallthru
          _
        // Predicated region
        $region17: #{tpu_custom_call.1} parent=11 // pred_check
          %p233 = pneg %p110
        $region18: #{tpu_custom_call.1} parent=11 // pred_check_branch
          %235 = sbr.rel (%p233) target = $region20
        $region19: #{tpu_custom_call.1} parent=11 // pred_region
          _
        $region20: #{tpu_custom_call.1} parent=11 // pred_fallthru
          _
        // Predicated region
        $region21: #{tpu_custom_call.1} parent=11 // pred_check
          %p236 = pneg %p131
        $region22: #{tpu_custom_call.1} parent=11 // pred_check_branch
          %238 = sbr.rel (%p236) target = $region24
        $region23: #{tpu_custom_call.1} parent=11 // pred_region
          _
        $region24: #{tpu_custom_call.1} parent=11 // pred_fallthru
          _
      $region12: #{tpu_custom_call.1} parent=5 // pred_fallthru
        _
      %p239 = scmp.lt.s32.totalorder %s19, 4
      // Predicated region
      $region25: #{tpu_custom_call.1} parent=5 // pred_check
        %p240 = pneg %p239
      $region26: #{tpu_custom_call.1} parent=5 // pred_check_branch
        %242 = sbr.rel (%p240) target = $region28
      $region27: #{tpu_custom_call.1} parent=5 // pred_region
        // Predicated region
        $region29: #{tpu_custom_call.1} parent=27 // pred_check
          %p243 = pneg %p62
        $region30: #{tpu_custom_call.1} parent=27 // pred_check_branch
          %245 = sbr.rel (%p243) target = $region32
        $region31: #{tpu_custom_call.1} parent=27 // pred_region
          %s246 = sadd.s32 %s27, %s28
          %p247 = scmp.lt.s32.totalorder %s26, 1
          %s248 = scalar_select %p247, %s26, 1
          %p249 = scmp.lt.s32.totalorder %s246, 1
          %s250 = scalar_select %p249, %s246, 1
          %s251 = smul.addr %s248, 2
          %s252 = sadd.s32 %s250, %s251
          %s253 = smul.addr %s252, 2
          %s254 = scalar_lea.vmem %s0, %s253
          %s255 = sadd.s32 %s27, %s28
        $region32: #{tpu_custom_call.1} parent=27 // pred_fallthru
          _
      $region28: #{tpu_custom_call.1} parent=5 // pred_fallthru
        _
      %p256 = scmp.le.s32.totalorder 1, %s19
      %p257 = scmp.lt.s32.totalorder %s19, 5
      %p258 = pnand %p256, %p257
      %p259 = pneg %p258
      // Predicated region
      $region33: #{tpu_custom_call.1} parent=5 // pred_check
        _
      $region34: #{tpu_custom_call.1} parent=5 // pred_check_branch
        %261 = sbr.rel (%p258) target = $region36
      $region35: #{tpu_custom_call.1} parent=5 // pred_region
        %s262 = ssub.s32 %s19, 1
        %s263 = sadd.s32 %s30, %s31
        %p264 = scmp.lt.s32.totalorder %s29, 1
        %s265 = scalar_select %p264, %s29, 1
        %p266 = scmp.lt.s32.totalorder %s263, 1
        %s267 = scalar_select %p266, %s263, 1
        %s268 = smul.addr %s265, 2
        %s269 = sadd.s32 %s267, %s268
        %s270 = smul.addr %s269, 2
        %s271 = scalar_lea.vmem %s0, %s270
        %p272 = pneg %p68
        %p273 = pneg %p65
        %p274 = pneg %p89
        %p275 = pneg %p86
        %p276 = pneg %p110
        %p277 = pneg %p107
        %p278 = pneg %p131
        %p279 = pneg %p128
        %p280 = pneg %p159
        %p281 = pneg %p156
        %s282 = sand.u32 %s146, 1
        %s283 = scalar_lea.sflag [#allocation3], %s282
        %s284 = sand.u32 %s146, 1
        %s285 = scalar_lea.vmem [#allocation2], %s284
        %p286 = pneg %p187
        %p287 = pneg %p184
        %s288 = sand.u32 %s24, 1
        %s289 = scalar_lea.sflag [#allocation5], %s288
        %s290 = sand.u32 %s174, 1
        %s291 = scalar_lea.vmem [#allocation4], %s290
        %p292 = pneg %p215
        %p293 = pneg %p212
        %s294 = sand.u32 %s24, 1
        %s295 = scalar_lea.sflag [#allocation5], %s294
        %s296 = sand.u32 %s202, 1
        %s297 = scalar_lea.vmem [#allocation6], %s296
        %s298 = sadd.s32 %s30, %s31
        %p299 = scmp.lt.s32.totalorder %s29, 1
        %s300 = scalar_select %p299, %s29, 1
        %p301 = scmp.lt.s32.totalorder %s298, 1
        %s302 = scalar_select %p301, %s298, 1
        %s303 = smul.addr %s300, 2
        %s304 = sadd.s32 %s302, %s303
        %s305 = smul.addr %s304, 2
        %s306 = scalar_lea.vmem %s0, %s305
        %s307 = sadd.s32 %s30, %s31
        %p308 = scmp.eq.s32.totalorder %s31, 0
        // Predicated region
        $region37: #{tpu_custom_call.1} parent=35 // pred_check
          %p309 = pneg %p308
        $region38: #{tpu_custom_call.1} parent=35 // pred_check_branch
          %311 = sbr.rel (%p309) target = $region40
        $region39: #{tpu_custom_call.1} parent=35 // pred_region
          %312 = vst [vmem:[%s285] sm:$0x1] -1e+30
          %313 = vst [vmem:[%s291] sm:$0x1] 0.0
          %314 = vst [vmem:[%s297] sm:$0x1] 0.0
        $region40: #{tpu_custom_call.1} parent=35 // pred_fallthru
          _
        %v315 = vld [vmem:[%s306] sm:$0x3]
        %v316 = vunpack.c.l.bf16 %v315
        %v317 = vld [vmem:[%s1] sm:$0xff]
        %v318 = vld [vmem:[%s1 + $0x8] sm:$0xff]
        %v319 = vld [vmem:[%s1 + $0x10] sm:$0xff]
        %v320 = vld [vmem:[%s1 + $0x18] sm:$0xff]
        %v321 = vld [vmem:[%s1 + $0x20] sm:$0x1]
        %323 = vset.pattern.permute.xlu0 0
        %324 = vperm.xlu0 %323, %v317
        %v325 = vpop.permute.xlu0 %324
        %328 = vset.pattern.permute.xlu0 0
        %329 = vperm.xlu0 %328, %v318
        %v330 = vpop.permute.xlu0 %329
        %333 = vset.pattern.permute.xlu0 0
        %334 = vperm.xlu0 %333, %v319
        %v335 = vpop.permute.xlu0 %334
        %338 = vset.pattern.permute.xlu0 0
        %339 = vperm.xlu0 %338, %v320
        %v340 = vpop.permute.xlu0 %339
        %343 = vset.pattern.permute.xlu0 0
        %344 = vperm.xlu0 %343, %v321
        %v345 = vpop.permute.xlu0 %344
        %v347 = vlaneseq
        %v348 = vshrl.u32 %v347, 7
        %v349 = vsub.s32 0, %v348
        %v350 = vrot.slane %v316, %v349
        %v351 = vmul.f32 %v325, %v350
        %v352 = vmul.f32 %v330, %v350
        %v353 = vmul.f32 %v335, %v350
        %v354 = vmul.f32 %v340, %v350
        %v355 = vmul.f32 %v345, %v350
        %356 = vset.pattern.permute.xlu0 1
        %357 = vperm.xlu0 %356, %v317
        %v358 = vpop.permute.xlu0 %357
        %360 = vset.pattern.permute.xlu0 1
        %361 = vperm.xlu0 %360, %v318
        %v362 = vpop.permute.xlu0 %361
        %364 = vset.pattern.permute.xlu0 1
        %365 = vperm.xlu0 %364, %v319
        %v366 = vpop.permute.xlu0 %365
        %368 = vset.pattern.permute.xlu0 1
        %369 = vperm.xlu0 %368, %v320
        %v370 = vpop.permute.xlu0 %369
        %372 = vset.pattern.permute.xlu0 1
        %373 = vperm.xlu0 %372, %v321
        %v374 = vpop.permute.xlu0 %373
        %v376 = vlaneseq
        %v377 = vshrl.u32 %v376, 7
        %v378 = vsub.s32 1, %v377
        %v379 = vrot.slane %v316, %v378
        %v380 = vmul.f32 %v358, %v379
        %v381 = vmul.f32 %v362, %v379
        %v382 = vmul.f32 %v366, %v379
        %v383 = vmul.f32 %v370, %v379
        %v384 = vmul.f32 %v374, %v379
        %v385 = vadd.f32 %v351, %v380
        %v386 = vadd.f32 %v352, %v381
        %v387 = vadd.f32 %v353, %v382
        %v388 = vadd.f32 %v354, %v383
        %v389 = vadd.f32 %v355, %v384
        %390 = vset.pattern.permute.xlu0 2
        %391 = vperm.xlu0 %390, %v317
        %v392 = vpop.permute.xlu0 %391
        %394 = vset.pattern.permute.xlu0 2
        %395 = vperm.xlu0 %394, %v318
        %v396 = vpop.permute.xlu0 %395
        %398 = vset.pattern.permute.xlu0 2
        %399 = vperm.xlu0 %398, %v319
        %v400 = vpop.permute.xlu0 %399
        %402 = vset.pattern.permute.xlu0 2
        %403 = vperm.xlu0 %402, %v320
        %v404 = vpop.permute.xlu0 %403
        %406 = vset.pattern.permute.xlu0 2
        %407 = vperm.xlu0 %406, %v321
        %v408 = vpop.permute.xlu0 %407
        %v410 = vlaneseq
        %v411 = vshrl.u32 %v410, 7
        %v412 = vsub.s32 2, %v411
        %v413 = vrot.slane %v316, %v412
        %v414 = vmul.f32 %v392, %v413
        %v415 = vmul.f32 %v396, %v413
        %v416 = vmul.f32 %v400, %v413
        %v417 = vmul.f32 %v404, %v413
        %v418 = vmul.f32 %v408, %v413
        %v419 = vadd.f32 %v385, %v414
        %v420 = vadd.f32 %v386, %v415
        %v421 = vadd.f32 %v387, %v416
        %v422 = vadd.f32 %v388, %v417
        %v423 = vadd.f32 %v389, %v418
        %424 = vset.pattern.permute.xlu0 3
        %425 = vperm.xlu0 %424, %v317
        %v426 = vpop.permute.xlu0 %425
        %428 = vset.pattern.permute.xlu0 3
        %429 = vperm.xlu0 %428, %v318
        %v430 = vpop.permute.xlu0 %429
        %432 = vset.pattern.permute.xlu0 3
        %433 = vperm.xlu0 %432, %v319
        %v434 = vpop.permute.xlu0 %433
        %436 = vset.pattern.permute.xlu0 3
        %437 = vperm.xlu0 %436, %v320
        %v438 = vpop.permute.xlu0 %437
        %440 = vset.pattern.permute.xlu0 3
        %441 = vperm.xlu0 %440, %v321
        %v442 = vpop.permute.xlu0 %441
        %v444 = vlaneseq
        %v445 = vshrl.u32 %v444, 7
        %v446 = vsub.s32 3, %v445
        %v447 = vrot.slane %v316, %v446
        %v448 = vmul.f32 %v426, %v447
        %v449 = vmul.f32 %v430, %v447
        %v450 = vmul.f32 %v434, %v447
        %v451 = vmul.f32 %v438, %v447
        %v452 = vmul.f32 %v442, %v447
        %v453 = vadd.f32 %v419, %v448
        %v454 = vadd.f32 %v420, %v449
        %v455 = vadd.f32 %v421, %v450
        %v456 = vadd.f32 %v422, %v451
        %v457 = vadd.f32 %v423, %v452
        %v458 = vld [vmem:[%s2] sm:$0xff]
        %v459 = vld [vmem:[%s2 + $0x8] sm:$0xff]
        %v460 = vld [vmem:[%s2 + $0x10] sm:$0xff]
        %v461 = vld [vmem:[%s2 + $0x18] sm:$0xff]
        %463 = vset.pattern.permute.xlu0 0
        %464 = vperm.xlu0 %463, %v458
        %v465 = vpop.permute.xlu0 %464
        %468 = vset.pattern.permute.xlu0 0
        %469 = vperm.xlu0 %468, %v459
        %v470 = vpop.permute.xlu0 %469
        %473 = vset.pattern.permute.xlu0 0
        %474 = vperm.xlu0 %473, %v460
        %v475 = vpop.permute.xlu0 %474
        %478 = vset.pattern.permute.xlu0 0
        %479 = vperm.xlu0 %478, %v461
        %v480 = vpop.permute.xlu0 %479
        %v482 = vadd.f32 %v453, %v465
        %v483 = vadd.f32 %v454, %v470
        %v484 = vadd.f32 %v455, %v475
        %v485 = vadd.f32 %v456, %v480
        %v486 = vtanh.pop %v482
        %v487 = vtanh.pop %v483
        %v488 = vtanh.pop %v484
        %v489 = vtanh.pop %v485
        %v490 = vld [vmem:[%s3] sm:$0x1]
        %vm491 = vcmask 261120
        %v493 = vsel %vm491, %v490, 0
        %495 = vmatprep.subr.mxu0 0.0
        %496 = vmatpush1.msra.mxu0 0.0
        %497 = vmatprep.subr.mxu0 0.0
        %498 = vmatpush1.msra.mxu0 0.0
        %499 = vmatprep.subr.mxu0 0.0
        %500 = vmatpush1.msra.mxu0 0.0
        %501 = vmatprep.subr.mxu0 0.0
        %502 = vmatpush1.msra.mxu0 0.0
        %503 = vmatprep.subr.mxu0 0.0
        %504 = vmatpush1.msra.mxu0 0.0
        %505 = vmatprep.subr.mxu0 0.0
        %506 = vmatpush1.msra.mxu0 0.0
        %507 = vmatprep.subr.mxu0 0.0
        %508 = vmatpush1.msra.mxu0 0.0
        %509 = vmatprep.subr.mxu0 0.0
        %510 = vmatpush1.msra.mxu0 0.0
        %511 = vmatprep.subr.mxu0 0.0
        %512 = vmatpush1.msra.mxu0 0.0
        %513 = vmatprep.subr.mxu0 0.0
        %514 = vmatpush1.msra.mxu0 0.0
        %515 = vmatprep.subr.mxu0 0.0
        %516 = vmatpush1.msra.mxu0 0.0
        %517 = vmatprep.subr.mxu0 0.0
        %518 = vmatpush1.msra.mxu0 0.0
        %519 = vmatprep.subr.mxu0 0.0
        %520 = vmatpush1.msra.mxu0 %v489
        %521 = vmatprep.subr.mxu0 0.0
        %522 = vmatpush1.msra.mxu0 %v488
        %523 = vmatprep.subr.mxu0 0.0
        %524 = vmatpush1.msra.mxu0 %v487
        %525 = vmatprep.subr.mxu0 0.0
        %526 = vmatpush1.msra.mxu0 %v486
        %527 = vmatprep.subr.mxu0 0.0
        %528 = vmatpush2.msra.mxu0 0.0
        %529 = vmatprep.subr.mxu0 0.0
        %530 = vmatpush2.msra.mxu0 0.0
        %531 = vmatprep.subr.mxu0 0.0
        %532 = vmatpush2.msra.mxu0 0.0
        %533 = vmatprep.subr.mxu0 0.0
        %534 = vmatpush2.msra.mxu0 0.0
        %535 = vmatprep.subr.mxu0 0.0
        %536 = vmatpush2.msra.mxu0 0.0
        %537 = vmatprep.subr.mxu0 0.0
        %538 = vmatpush2.msra.mxu0 0.0
        %539 = vmatprep.subr.mxu0 0.0
        %540 = vmatpush2.msra.mxu0 0.0
        %541 = vmatprep.subr.mxu0 0.0
        %542 = vmatpush2.msra.mxu0 0.0
        %543 = vmatprep.subr.mxu0 0.0
        %544 = vmatpush2.msra.mxu0 0.0
        %545 = vmatprep.subr.mxu0 0.0
        %546 = vmatpush2.msra.mxu0 0.0
        %547 = vmatprep.subr.mxu0 0.0
        %548 = vmatpush2.msra.mxu0 0.0
        %549 = vmatprep.subr.mxu0 0.0
        %550 = vmatpush2.msra.mxu0 0.0
        %551 = vmatprep.subr.mxu0 0.0
        %552 = vmatpush2.msra.mxu0 0.0
        %553 = vmatprep.subr.mxu0 0.0
        %554 = vmatpush2.msra.mxu0 0.0
        %555 = vmatprep.subr.mxu0 0.0
        %556 = vmatpush2.msra.mxu0 0.0
        %557 = vmatprep.subr.mxu0 0.0
        %558 = vmatpush2.msra.mxu0 0.0
        %559 = vmatprep.mubr.f32.mxu0 0.0
        %560 = vmatmul.mubr.f32.gmra.mxu0 %v493
        %v561 = vpop.f32.mrf.mxu0
        %v562 = vadd.f32 0.0, %v561
        %v563 = vpop.f32.mrf.mxu0
        %564 = vdwg.mxu0
        %v565 = vld [vmem:[%s285] sm:$0x1]
        %v566 = vld [vmem:[%s291] sm:$0x1]
        %v567 = vld [vmem:[%s297] sm:$0x1]
        %v568 = vmax.f32 %v565, %v562
        %v569 = vsub.f32 %v565, %v568
        %v570 = vmul.f32 %v569, 1.442695
        %v571 = vpow.pop %v570
        %v572 = vsub.f32 %v562, %v568
        %v573 = vmul.f32 %v572, 1.442695
        %v574 = vpow.pop %v573
        %v575 = vmul.f32 %v571, %v566
        %v576 = vadd.f32 %v575, %v574
        %v577 = vmul.f32 %v571, %v567
        %v578 = vmul.f32 %v574, %v457
        %v579 = vadd.f32 %v577, %v578
        %580 = vst [vmem:[%s285] sm:$0x1] %v568
        %581 = vst [vmem:[%s291] sm:$0x1] %v576
        %582 = vst [vmem:[%s297] sm:$0x1] %v579
        %s583 = sand.u32 %s146, 1
        %s584 = scalar_lea.sflag [#allocation3], %s583
        %s585 = sand.u32 %s146, 1
        %s586 = scalar_lea.vmem [#allocation2], %s585
        %s587 = sand.u32 %s24, 1
        %s588 = scalar_lea.sflag [#allocation5], %s587
        %s589 = sand.u32 %s174, 1
        %s590 = scalar_lea.vmem [#allocation4], %s589
        %s591 = sand.u32 %s24, 1
        %s592 = scalar_lea.sflag [#allocation5], %s591
        %s593 = sand.u32 %s202, 1
        %s594 = scalar_lea.vmem [#allocation6], %s593
        // Predicated region
        $region41: #{tpu_custom_call.1} parent=35 // pred_check
          %p595 = pneg %p156
        $region42: #{tpu_custom_call.1} parent=35 // pred_check_branch
          %597 = sbr.rel (%p595) target = $region44
        $region43: #{tpu_custom_call.1} parent=35 // pred_region
          %s599 = ssub.s32 16, 16
          %600 = vsyncadd %s584, %s599
          %s601 = smul.addr %s29, 2
          %s602 = sadd.s32 %s30, %s601
          %s603 = smul.addr %s602, 16
          %s604 = scalar_lea.hbm %s4, %s603
          %s606 = sshll.u32 %s586, 4
          %s607 = int_to_ptr.vmem [resolvable:$true] %s606
          %609 = dma.vmem_to_hbm [thread:$0]  %s607, 16, %s604, %s584
        $region44: #{tpu_custom_call.1} parent=35 // pred_fallthru
          _
        // Predicated region
        $region45: #{tpu_custom_call.1} parent=35 // pred_check
          %p610 = pneg %p184
        $region46: #{tpu_custom_call.1} parent=35 // pred_check_branch
          %612 = sbr.rel (%p610) target = $region48
        $region47: #{tpu_custom_call.1} parent=35 // pred_region
          %s614 = ssub.s32 16, 16
          %615 = vsyncadd %s588, %s614
          %s616 = smul.addr %s29, 2
          %s617 = sadd.s32 %s30, %s616
          %s618 = smul.addr %s617, 16
          %s619 = scalar_lea.hbm %s5, %s618
          %s621 = sshll.u32 %s590, 4
          %s622 = int_to_ptr.vmem [resolvable:$true] %s621
          %624 = dma.vmem_to_hbm [thread:$0]  %s622, 16, %s619, %s588
        $region48: #{tpu_custom_call.1} parent=35 // pred_fallthru
          _
        // Predicated region
        $region49: #{tpu_custom_call.1} parent=35 // pred_check
          %p625 = pneg %p212
        $region50: #{tpu_custom_call.1} parent=35 // pred_check_branch
          %627 = sbr.rel (%p625) target = $region52
        $region51: #{tpu_custom_call.1} parent=35 // pred_region
          %s629 = ssub.s32 16, 16
          %630 = vsyncadd %s592, %s629
          %s631 = smul.addr %s29, 2
          %s632 = sadd.s32 %s30, %s631
          %s633 = smul.addr %s632, 16
          %s634 = scalar_lea.hbm %s6, %s633
          %s636 = sshll.u32 %s594, 4
          %s637 = int_to_ptr.vmem [resolvable:$true] %s636
          %639 = dma.vmem_to_hbm [thread:$0]  %s637, 16, %s634, %s592
        $region52: #{tpu_custom_call.1} parent=35 // pred_fallthru
          _
      $region36: #{tpu_custom_call.1} parent=5 // pred_fallthru
        _
      %p640 = scmp.le.s32.totalorder 2, %s19
      // Predicated region
      $region53: #{tpu_custom_call.1} parent=5 // pred_check
        %p641 = pneg %p640
      $region54: #{tpu_custom_call.1} parent=5 // pred_check_branch
        %643 = sbr.rel (%p641) target = $region56
      $region55: #{tpu_custom_call.1} parent=5 // pred_region
        %s644 = ssub.s32 %s19, 2
        // Predicated region
        $region57: #{tpu_custom_call.1} parent=55 // pred_check
          %p645 = pneg %p162
        $region58: #{tpu_custom_call.1} parent=55 // pred_check_branch
          %647 = sbr.rel (%p645) target = $region60
        $region59: #{tpu_custom_call.1} parent=55 // pred_region
          %s648 = sand.u32 %s147, 1
          %s649 = scalar_lea.sflag [#allocation3], %s648
          %s650 = sand.u32 %s147, 1
          %s651 = scalar_lea.vmem [#allocation2], %s650
          %652 = dma.done %s649, 16
        $region60: #{tpu_custom_call.1} parent=55 // pred_fallthru
          _
        // Predicated region
        $region61: #{tpu_custom_call.1} parent=55 // pred_check
          %p653 = pneg %p190
        $region62: #{tpu_custom_call.1} parent=55 // pred_check_branch
          %655 = sbr.rel (%p653) target = $region64
        $region63: #{tpu_custom_call.1} parent=55 // pred_region
          %s656 = sand.u32 %s25, 1
          %s657 = scalar_lea.sflag [#allocation5], %s656
          %s658 = sand.u32 %s175, 1
          %s659 = scalar_lea.vmem [#allocation4], %s658
          %660 = dma.done %s657, 16
        $region64: #{tpu_custom_call.1} parent=55 // pred_fallthru
          _
        // Predicated region
        $region65: #{tpu_custom_call.1} parent=55 // pred_check
          %p661 = pneg %p218
        $region66: #{tpu_custom_call.1} parent=55 // pred_check_branch
          %663 = sbr.rel (%p661) target = $region68
        $region67: #{tpu_custom_call.1} parent=55 // pred_region
          %s664 = sand.u32 %s25, 1
          %s665 = scalar_lea.sflag [#allocation5], %s664
          %s666 = sand.u32 %s203, 1
          %s667 = scalar_lea.vmem [#allocation6], %s666
          %668 = dma.done %s665, 16
        $region68: #{tpu_custom_call.1} parent=55 // pred_fallthru
          _
      $region56: #{tpu_custom_call.1} parent=5 // pred_fallthru
        _
    $region6: #{tpu_custom_call.1} parent=1 // loop_footer
      %s23 = sadd.s32 1, %s19
    $region7: #{tpu_custom_call.1} parent=1 // loop_footer_branch
      %18 = sbr.rel target = $region3
    $region8: #{tpu_custom_call.1} parent=1 // loop_exit
      _
    %669 = vsyncpa [#allocation3], 1
    %s670 = scalar_lea.sflag [#allocation3], 1
    %671 = vsyncpa %s670, 1
    %672 = vsyncpa [#allocation5], 1
    %s673 = scalar_lea.sflag [#allocation5], 1
    %674 = vsyncpa %s673, 1

</llo_original>
